<compile_context>
chip_gen: v7x
topology: tpu7x:2x2x1
jax: 0.10.0
libtpu: 0.0.40
codegen_flags: <defaults>
</compile_context>

<pallas_src>
import jax
import jax.numpy as jnp
import numpy as np
from jax.experimental import pallas as pl
from jax.experimental.pallas import tpu as pltpu


def rnn_cls_kernel(onehot_ref, embp_ref, whh_ref, wl_ref, bl_ref, out_ref):
    # onehot_ref : (S*B, V_pad) f32  -- time-major one-hot token rows
    # embp_ref   : (V_pad, D)   f32  -- emb @ w_ih^T + (b_ih + b_hh), padded rows = 0
    # whh_ref    : (D, D)       f32  -- w_hh^T (pre-transposed)
    # wl_ref     : (D, C_pad)   f32  -- w_lin^T, zero-padded to lane-dense width
    # bl_ref     : (1, C_pad)   f32  -- b_lin, padded columns = -1e30
    # out_ref    : (B, C_pad)   f32  -- softmax probabilities (padded cols -> 0)
    SB = onehot_ref.shape[0]
    B = out_ref.shape[0]
    S = SB // B
    D = whh_ref.shape[0]

    # Embedding lookup + input projection + fused bias as ONE MXU matmul
    # (projection and bias were folded into emb_proj in the wrapper).
    xw = jnp.dot(onehot_ref[...], embp_ref[...],
                 preferred_element_type=jnp.float32)          # (SB, D)

    whh = whh_ref[...]
    h = jnp.zeros((B, D), dtype=jnp.float32)
    # Fully unrolled serial recurrence: one tiny matmul + tanh per step,
    # static sublane-aligned slices of xw.
    for t in range(S):
        h = jnp.tanh(xw[t * B:(t + 1) * B, :]
                     + jnp.dot(h, whh, preferred_element_type=jnp.float32))

    logits = jnp.dot(h, wl_ref[...],
                     preferred_element_type=jnp.float32) + bl_ref[...]  # (B, C_pad)

    # softmax over dim=1; padded columns carry bias -1e30 -> exp underflows to
    # exactly 0, so the denominator equals the sum over real classes.
    m = jnp.max(logits, axis=1, keepdims=True)
    e = jnp.exp(logits - m)
    out_ref[...] = e / jnp.sum(e, axis=1, keepdims=True)


def rnn_classifier_forward(ids, emb, w_ih, w_hh, b_ih, b_hh, w_lin, b_lin):
    """ids: (B, S) int32. Weights in PyTorch shapes:
       w_ih, w_hh: (D, D); b_ih, b_hh: (D,); w_lin: (C, D); b_lin: (C,)."""
    B, S = ids.shape
    V, D = emb.shape
    C = w_lin.shape[0]

    # Pad batch to a sublane multiple (8); padded rows (token 0) are computed
    # and sliced off.  If serving batch grows, raise this toward the MXU row
    # count (128 on v5e, 256 on v6e/v7x) instead.
    B_pad = max(8, ((B + 7) // 8) * 8)
    # Lane-dense padding of the vocab (contraction dim) and class (output) dims.
    V_pad = ((V + 127) // 128) * 128
    C_pad = ((C + 127) // 128) * 128

    ids_p = ids.astype(jnp.int32)
    if B_pad != B:
        ids_p = jnp.pad(ids_p, ((0, B_pad - B), (0, 0)))
    # time-major flatten: row n = t*B_pad + b
    ids_flat = ids_p.T.reshape(S * B_pad)
    onehot = jax.nn.one_hot(ids_flat, V_pad, dtype=jnp.float32)   # (S*B_pad, V_pad)

    # Fold the input projection and both RNN biases into the embedding table.
    emb_proj = emb @ w_ih.T + (b_ih + b_hh)[None, :]              # (V, D)
    emb_proj = jnp.pad(emb_proj, ((0, V_pad - V), (0, 0)))        # (V_pad, D)

    whh_t = w_hh.T                                                # (D, D)
    wl_pad = jnp.pad(w_lin.T.astype(jnp.float32),
                     ((0, 0), (0, C_pad - C)))                    # (D, C_pad)
    bl_pad = jnp.pad(b_lin.reshape(1, C).astype(jnp.float32),
                     ((0, 0), (0, C_pad - C)),
                     constant_values=-1e30)                       # (1, C_pad)

    vmem = pl.BlockSpec(memory_space=pltpu.MemorySpace.VMEM)
    out = pl.pallas_call(
        rnn_cls_kernel,
        out_shape=jax.ShapeDtypeStruct((B_pad, C_pad), jnp.float32),
        in_specs=[vmem] * 5,
        out_specs=vmem,
    )(onehot, emb_proj, whh_t, wl_pad, bl_pad)
    return out[:B, :C]


def reference_forward(ids, emb, w_ih, w_hh, b_ih, b_hh, w_lin, b_lin):
    """Pure-JAX replica of TorchModel.forward(x, y=None)."""
    x = emb[ids]                                # (B, S, D)
    B, S, D = x.shape
    h = jnp.zeros((B, D), dtype=jnp.float32)
    for t in range(S):
        h = jnp.tanh(x[:, t, :] @ w_ih.T + b_ih + h @ w_hh.T + b_hh)
    logits = h @ w_lin.T + b_lin
    return jax.nn.softmax(logits, axis=1)


if __name__ == "__main__":
    # Small shapes implied by the module:
    B = 4                 # batch
    S = 8                 # sentence_length (seq len)
    D = 32                # input_size == hidden size
    V = 30                # len(vocab)
    C = S + 1             # num classes = sentence_length + 1

    key = jax.random.PRNGKey(0)
    k = jax.random.split(key, 8)

    bound = 1.0 / np.sqrt(D)
    emb   = jax.random.normal(k[0], (V, D), dtype=jnp.float32)
    w_ih  = jax.random.uniform(k[1], (D, D), jnp.float32, -bound, bound)
    w_hh  = jax.random.uniform(k[2], (D, D), jnp.float32, -bound, bound)
    b_ih  = jax.random.uniform(k[3], (D,),   jnp.float32, -bound, bound)
    b_hh  = jax.random.uniform(k[4], (D,),   jnp.float32, -bound, bound)
    w_lin = jax.random.uniform(k[5], (C, D), jnp.float32, -bound, bound)
    b_lin = jax.random.uniform(k[6], (C,),   jnp.float32, -bound, bound)

    x_ids = jax.random.randint(k[7], (B, S), 0, V, dtype=jnp.int32)

    probs = rnn_classifier_forward(x_ids, emb, w_ih, w_hh, b_ih, b_hh,
                                   w_lin, b_lin)
    probs = jax.block_until_ready(probs)

    ref = reference_forward(x_ids, emb, w_ih, w_hh, b_ih, b_hh, w_lin, b_lin)
    np.testing.assert_allclose(np.asarray(probs), np.asarray(ref),
                               rtol=1e-5, atol=1e-5)
    assert probs.shape == (B, C)
    np.testing.assert_allclose(np.asarray(probs).sum(axis=1), 1.0, atol=1e-5)

    print("KERNEL_OK")
</pallas_src>

<mosaic_0001>
module attributes {stable_mosaic.version = 11 : i64} {
  func.func @rnn_cls_kernel(%arg0: memref<64x128xf32, #tpu.memory_space<vmem>>, %arg1: memref<128x32xf32, #tpu.memory_space<vmem>>, %arg2: memref<32x32xf32, #tpu.memory_space<vmem>>, %arg3: memref<32x128xf32, #tpu.memory_space<vmem>>, %arg4: memref<1x128xf32, #tpu.memory_space<vmem>>, %arg5: memref<8x128xf32, #tpu.memory_space<vmem>>) attributes {dimension_semantics = [], scalar_prefetch = 0 : i64, scratch_operands = 0 : i64, tpu.core_type = #tpu.core_type<tc>} {
    %c0 = arith.constant 0 : index
    %c0_0 = arith.constant 0 : index
    %0 = vector.load %arg0[%c0, %c0_0] : memref<64x128xf32, #tpu.memory_space<vmem>>, vector<64x128xf32>
    %c0_1 = arith.constant 0 : index
    %c0_2 = arith.constant 0 : index
    %1 = vector.load %arg1[%c0_1, %c0_2] : memref<128x32xf32, #tpu.memory_space<vmem>>, vector<128x32xf32>
    %cst = arith.constant dense<0.000000e+00> : vector<64x32xf32>
    %2 = tpu.matmul %0, %1, %cst {dimension_numbers = #tpu.dot_dimension_numbers<[1], [0], [0], [1], [0, 0, 1, 1], [], []>} : vector<64x128xf32>, vector<128x32xf32>, vector<64x32xf32> -> vector<64x32xf32>
    %c0_3 = arith.constant 0 : index
    %c0_4 = arith.constant 0 : index
    %3 = vector.load %arg2[%c0_3, %c0_4] : memref<32x32xf32, #tpu.memory_space<vmem>>, vector<32x32xf32>
    %cst_5 = arith.constant 0.000000e+00 : f32
    %4 = vector.broadcast %cst_5 : f32 to vector<8x32xf32>
    %5 = vector.extract_strided_slice %2 {offsets = [0, 0], sizes = [8, 32], strides = [1, 1]} : vector<64x32xf32> to vector<8x32xf32>
    %cst_6 = arith.constant dense<0.000000e+00> : vector<8x32xf32>
    %6 = tpu.matmul %4, %3, %cst_6 {dimension_numbers = #tpu.dot_dimension_numbers<[1], [0], [0], [1], [0, 0, 1, 1], [], []>} : vector<8x32xf32>, vector<32x32xf32>, vector<8x32xf32> -> vector<8x32xf32>
    %7 = arith.addf %5, %6 : vector<8x32xf32>
    %8 = math.tanh %7 : vector<8x32xf32>
    %9 = vector.extract_strided_slice %2 {offsets = [8, 0], sizes = [8, 32], strides = [1, 1]} : vector<64x32xf32> to vector<8x32xf32>
    %cst_7 = arith.constant dense<0.000000e+00> : vector<8x32xf32>
    %10 = tpu.matmul %8, %3, %cst_7 {dimension_numbers = #tpu.dot_dimension_numbers<[1], [0], [0], [1], [0, 0, 1, 1], [], []>} : vector<8x32xf32>, vector<32x32xf32>, vector<8x32xf32> -> vector<8x32xf32>
    %11 = arith.addf %9, %10 : vector<8x32xf32>
    %12 = math.tanh %11 : vector<8x32xf32>
    %13 = vector.extract_strided_slice %2 {offsets = [16, 0], sizes = [8, 32], strides = [1, 1]} : vector<64x32xf32> to vector<8x32xf32>
    %cst_8 = arith.constant dense<0.000000e+00> : vector<8x32xf32>
    %14 = tpu.matmul %12, %3, %cst_8 {dimension_numbers = #tpu.dot_dimension_numbers<[1], [0], [0], [1], [0, 0, 1, 1], [], []>} : vector<8x32xf32>, vector<32x32xf32>, vector<8x32xf32> -> vector<8x32xf32>
    %15 = arith.addf %13, %14 : vector<8x32xf32>
    %16 = math.tanh %15 : vector<8x32xf32>
    %17 = vector.extract_strided_slice %2 {offsets = [24, 0], sizes = [8, 32], strides = [1, 1]} : vector<64x32xf32> to vector<8x32xf32>
    %cst_9 = arith.constant dense<0.000000e+00> : vector<8x32xf32>
    %18 = tpu.matmul %16, %3, %cst_9 {dimension_numbers = #tpu.dot_dimension_numbers<[1], [0], [0], [1], [0, 0, 1, 1], [], []>} : vector<8x32xf32>, vector<32x32xf32>, vector<8x32xf32> -> vector<8x32xf32>
    %19 = arith.addf %17, %18 : vector<8x32xf32>
    %20 = math.tanh %19 : vector<8x32xf32>
    %21 = vector.extract_strided_slice %2 {offsets = [32, 0], sizes = [8, 32], strides = [1, 1]} : vector<64x32xf32> to vector<8x32xf32>
    %cst_10 = arith.constant dense<0.000000e+00> : vector<8x32xf32>
    %22 = tpu.matmul %20, %3, %cst_10 {dimension_numbers = #tpu.dot_dimension_numbers<[1], [0], [0], [1], [0, 0, 1, 1], [], []>} : vector<8x32xf32>, vector<32x32xf32>, vector<8x32xf32> -> vector<8x32xf32>
    %23 = arith.addf %21, %22 : vector<8x32xf32>
    %24 = math.tanh %23 : vector<8x32xf32>
    %25 = vector.extract_strided_slice %2 {offsets = [40, 0], sizes = [8, 32], strides = [1, 1]} : vector<64x32xf32> to vector<8x32xf32>
    %cst_11 = arith.constant dense<0.000000e+00> : vector<8x32xf32>
    %26 = tpu.matmul %24, %3, %cst_11 {dimension_numbers = #tpu.dot_dimension_numbers<[1], [0], [0], [1], [0, 0, 1, 1], [], []>} : vector<8x32xf32>, vector<32x32xf32>, vector<8x32xf32> -> vector<8x32xf32>
    %27 = arith.addf %25, %26 : vector<8x32xf32>
    %28 = math.tanh %27 : vector<8x32xf32>
    %29 = vector.extract_strided_slice %2 {offsets = [48, 0], sizes = [8, 32], strides = [1, 1]} : vector<64x32xf32> to vector<8x32xf32>
    %cst_12 = arith.constant dense<0.000000e+00> : vector<8x32xf32>
    %30 = tpu.matmul %28, %3, %cst_12 {dimension_numbers = #tpu.dot_dimension_numbers<[1], [0], [0], [1], [0, 0, 1, 1], [], []>} : vector<8x32xf32>, vector<32x32xf32>, vector<8x32xf32> -> vector<8x32xf32>
    %31 = arith.addf %29, %30 : vector<8x32xf32>
    %32 = math.tanh %31 : vector<8x32xf32>
    %33 = vector.extract_strided_slice %2 {offsets = [56, 0], sizes = [8, 32], strides = [1, 1]} : vector<64x32xf32> to vector<8x32xf32>
    %cst_13 = arith.constant dense<0.000000e+00> : vector<8x32xf32>
    %34 = tpu.matmul %32, %3, %cst_13 {dimension_numbers = #tpu.dot_dimension_numbers<[1], [0], [0], [1], [0, 0, 1, 1], [], []>} : vector<8x32xf32>, vector<32x32xf32>, vector<8x32xf32> -> vector<8x32xf32>
    %35 = arith.addf %33, %34 : vector<8x32xf32>
    %36 = math.tanh %35 : vector<8x32xf32>
    %c0_14 = arith.constant 0 : index
    %c0_15 = arith.constant 0 : index
    %37 = vector.load %arg3[%c0_14, %c0_15] : memref<32x128xf32, #tpu.memory_space<vmem>>, vector<32x128xf32>
    %cst_16 = arith.constant dense<0.000000e+00> : vector<8x128xf32>
    %38 = tpu.matmul %36, %37, %cst_16 {dimension_numbers = #tpu.dot_dimension_numbers<[1], [0], [0], [1], [0, 0, 1, 1], [], []>} : vector<8x32xf32>, vector<32x128xf32>, vector<8x128xf32> -> vector<8x128xf32>
    %c0_17 = arith.constant 0 : index
    %c0_18 = arith.constant 0 : index
    %39 = vector.load %arg4[%c0_17, %c0_18] : memref<1x128xf32, #tpu.memory_space<vmem>>, vector<1x128xf32>
    %40 = vector.broadcast %39 : vector<1x128xf32> to vector<8x128xf32>
    %41 = arith.addf %38, %40 : vector<8x128xf32>
    %cst_19 = arith.constant dense<0xFF800000> : vector<8xf32>
    %42 = vector.multi_reduction <maximumf>, %41, %cst_19 [1] : vector<8x128xf32> to vector<8xf32>
    %43 = vector.shape_cast %42 : vector<8xf32> to vector<8x1xf32>
    %44 = vector.broadcast %43 : vector<8x1xf32> to vector<8x128xf32>
    %45 = arith.subf %41, %44 : vector<8x128xf32>
    %46 = math.exp %45 : vector<8x128xf32>
    %cst_20 = arith.constant dense<0.000000e+00> : vector<8xf32>
    %47 = vector.multi_reduction <add>, %46, %cst_20 [1] : vector<8x128xf32> to vector<8xf32>
    %48 = vector.shape_cast %47 : vector<8xf32> to vector<8x1xf32>
    %49 = vector.broadcast %48 : vector<8x1xf32> to vector<8x128xf32>
    %50 = arith.divf %46, %49 : vector<8x128xf32>
    %c0_21 = arith.constant 0 : index
    %c0_22 = arith.constant 0 : index
    %51 = vector.load %arg5[%c0_21, %c0_22] : memref<8x128xf32, #tpu.memory_space<vmem>>, vector<8x128xf32>
    tpu.vector_store %arg5[%c0_21, %c0_22], %50 {strides = array<i32>} : memref<8x128xf32, #tpu.memory_space<vmem>>, vector<8x128xf32>,
    return
  }
}

</mosaic_0001>

<llo_original>
// kernel: tpu_custom_call.1
$region0: #{tpu_custom_call.1}
  #allocation0 [shape = 'u32[]', space=smem, size = 0x4, offset = 0x4, fixed_abs, tag = 'smem constant byte address 0x4 - core index']
  #allocation1 [shape = 'u32[144,128]{1,0:T(1,128)}', space=vmem, size = 0x12000, scoped, tag = 'internal scratch']
  %s0 = inlined_call_operand.vmem [shape: f32[64,128], index: 0, kind: input, shape index: {}]
  %s1 = inlined_call_operand.vmem [shape: f32[128,32], index: 1, kind: input, shape index: {}]
  %s2 = inlined_call_operand.vmem [shape: f32[32,32], index: 2, kind: input, shape index: {}]
  %s3 = inlined_call_operand.vmem [shape: f32[32,128], index: 3, kind: input, shape index: {}]
  %s4 = inlined_call_operand.vmem [shape: f32[1,128], index: 4, kind: input, shape index: {}]
  %s5 = inlined_call_operand.hbm [shape: f32[8,128], index: 5, kind: output, shape index: {}]
  %s6 = sld [smem:[#allocation0]]
  $region30: #{tpu_custom_call.1} parent=0
    _
  %s8 = ssub.s32 1, %s6
  %s9 = scalar_select 0, %s8, %s6
  $region1: #{tpu_custom_call.1} parent=0
    #allocation2 [shape = 'u8[4096]{0}', space=vmem, size = 0x1000, scoped, tag = 'output window, operand 0, single buffered']
    #allocation3 [shape = 's32[1]{0}', space=sflag, size = 0x4, scoped, tag = 'scoped memory for tpu_custom_call.1']
    %10 = vsyncpa [#allocation3], 0
    // Predicated region
    $region2: #{tpu_custom_call.1} parent=1 // pred_check
      _
    $region3: #{tpu_custom_call.1} parent=1 // pred_check_branch
      %12 = sbr.rel (0) target = $region5
    $region4: #{tpu_custom_call.1} parent=1 // pred_region
      _
    $region5: #{tpu_custom_call.1} parent=1 // pred_fallthru
      _
    // Predicated region
    $region6: #{tpu_custom_call.1} parent=1 // pred_check
      _
    $region7: #{tpu_custom_call.1} parent=1 // pred_check_branch
      %14 = sbr.rel (0) target = $region9
    $region8: #{tpu_custom_call.1} parent=1 // pred_region
      _
    $region9: #{tpu_custom_call.1} parent=1 // pred_fallthru
      _
    // Predicated region
    $region10: #{tpu_custom_call.1} parent=1 // pred_check
      _
    $region11: #{tpu_custom_call.1} parent=1 // pred_check_branch
      %16 = sbr.rel (0) target = $region13
    $region12: #{tpu_custom_call.1} parent=1 // pred_region
      _
    $region13: #{tpu_custom_call.1} parent=1 // pred_fallthru
      _
    // Predicated region
    $region14: #{tpu_custom_call.1} parent=1 // pred_check
      _
    $region15: #{tpu_custom_call.1} parent=1 // pred_check_branch
      %18 = sbr.rel (0) target = $region17
    $region16: #{tpu_custom_call.1} parent=1 // pred_region
      _
    $region17: #{tpu_custom_call.1} parent=1 // pred_fallthru
      _
    // Predicated region
    $region18: #{tpu_custom_call.1} parent=1 // pred_check
      _
    $region19: #{tpu_custom_call.1} parent=1 // pred_check_branch
      %20 = sbr.rel (0) target = $region21
    $region20: #{tpu_custom_call.1} parent=1 // pred_region
      _
    $region21: #{tpu_custom_call.1} parent=1 // pred_fallthru
      _
    %v21 = vld [vmem:[%s0] sm:$0xff]
    %v22 = vld [vmem:[%s0 + $0x8] sm:$0xff]
    %v23 = vld [vmem:[%s0 + $0x10] sm:$0xff]
    %v24 = vld [vmem:[%s0 + $0x18] sm:$0xff]
    %v25 = vld [vmem:[%s0 + $0x20] sm:$0xff]
    %v26 = vld [vmem:[%s0 + $0x28] sm:$0xff]
    %v27 = vld [vmem:[%s0 + $0x30] sm:$0xff]
    %v28 = vld [vmem:[%s0 + $0x38] sm:$0xff]
    %v29 = vld [vmem:[%s1] sm:$0xff]
    %v30 = vld [vmem:[%s1 + $0x8] sm:$0xff]
    %v31 = vld [vmem:[%s1 + $0x10] sm:$0xff]
    %v32 = vld [vmem:[%s1 + $0x18] sm:$0xff]
    %v33 = vld [vmem:[%s1 + $0x20] sm:$0xff]
    %v34 = vld [vmem:[%s1 + $0x28] sm:$0xff]
    %v35 = vld [vmem:[%s1 + $0x30] sm:$0xff]
    %v36 = vld [vmem:[%s1 + $0x38] sm:$0xff]
    %v37 = vld [vmem:[%s1 + $0x40] sm:$0xff]
    %v38 = vld [vmem:[%s1 + $0x48] sm:$0xff]
    %v39 = vld [vmem:[%s1 + $0x50] sm:$0xff]
    %v40 = vld [vmem:[%s1 + $0x58] sm:$0xff]
    %v41 = vld [vmem:[%s1 + $0x60] sm:$0xff]
    %v42 = vld [vmem:[%s1 + $0x68] sm:$0xff]
    %v43 = vld [vmem:[%s1 + $0x70] sm:$0xff]
    %v44 = vld [vmem:[%s1 + $0x78] sm:$0xff]
    %45 = vmatprep.subr.mxu0 0.0
    %46 = vmatpush1.msra.mxu0 %v29
    %47 = vmatprep.subr.mxu0 0.0
    %48 = vmatpush1.msra.mxu0 %v30
    %49 = vmatprep.subr.mxu0 0.0
    %50 = vmatpush1.msra.mxu0 %v31
    %51 = vmatprep.subr.mxu0 0.0
    %52 = vmatpush1.msra.mxu0 %v32
    %53 = vmatprep.subr.mxu0 0.0
    %54 = vmatpush1.msra.mxu0 %v33
    %55 = vmatprep.subr.mxu0 0.0
    %56 = vmatpush1.msra.mxu0 %v34
    %57 = vmatprep.subr.mxu0 0.0
    %58 = vmatpush1.msra.mxu0 %v35
    %59 = vmatprep.subr.mxu0 0.0
    %60 = vmatpush1.msra.mxu0 %v36
    %61 = vmatprep.subr.mxu0 0.0
    %62 = vmatpush1.msra.mxu0 %v37
    %63 = vmatprep.subr.mxu0 0.0
    %64 = vmatpush1.msra.mxu0 %v38
    %65 = vmatprep.subr.mxu0 0.0
    %66 = vmatpush1.msra.mxu0 %v39
    %67 = vmatprep.subr.mxu0 0.0
    %68 = vmatpush1.msra.mxu0 %v40
    %69 = vmatprep.subr.mxu0 0.0
    %70 = vmatpush1.msra.mxu0 %v41
    %71 = vmatprep.subr.mxu0 0.0
    %72 = vmatpush1.msra.mxu0 %v42
    %73 = vmatprep.subr.mxu0 0.0
    %74 = vmatpush1.msra.mxu0 %v43
    %75 = vmatprep.subr.mxu0 0.0
    %76 = vmatpush1.msra.mxu0 %v44
    %77 = vmatprep.subr.mxu0 0.0
    %78 = vmatpush1.msra.mxu0 0.0
    %79 = vmatprep.subr.mxu0 0.0
    %80 = vmatpush1.msra.mxu0 0.0
    %81 = vmatprep.subr.mxu0 0.0
    %82 = vmatpush1.msra.mxu0 0.0
    %83 = vmatprep.subr.mxu0 0.0
    %84 = vmatpush1.msra.mxu0 0.0
    %85 = vmatprep.subr.mxu0 0.0
    %86 = vmatpush1.msra.mxu0 0.0
    %87 = vmatprep.subr.mxu0 0.0
    %88 = vmatpush1.msra.mxu0 0.0
    %89 = vmatprep.subr.mxu0 0.0
    %90 = vmatpush1.msra.mxu0 0.0
    %91 = vmatprep.subr.mxu0 0.0
    %92 = vmatpush1.msra.mxu0 0.0
    %93 = vmatprep.subr.mxu0 0.0
    %94 = vmatpush1.msra.mxu0 0.0
    %95 = vmatprep.subr.mxu0 0.0
    %96 = vmatpush1.msra.mxu0 0.0
    %97 = vmatprep.subr.mxu0 0.0
    %98 = vmatpush1.msra.mxu0 0.0
    %99 = vmatprep.subr.mxu0 0.0
    %100 = vmatpush1.msra.mxu0 0.0
    %101 = vmatprep.subr.mxu0 0.0
    %102 = vmatpush1.msra.mxu0 0.0
    %103 = vmatprep.subr.mxu0 0.0
    %104 = vmatpush1.msra.mxu0 0.0
    %105 = vmatprep.subr.mxu0 0.0
    %106 = vmatpush1.msra.mxu0 0.0
    %107 = vmatprep.subr.mxu0 0.0
    %108 = vmatpush1.msra.mxu0 0.0
    %109 = vmatprep.mubr.f32.mxu0 0.0
    %110 = vmatmul.mubr.f32.gmra.mrb[0].mxu0 %v21
    %v111 = vpop.f32.mrb[0].mxu0
    %v112 = vadd.f32 0.0, %v111
    %v113 = vpop.f32.mrb[0].mxu0
    %114 = vmatprep.mubr.f32.mxu0 0.0
    %115 = vmatmul.mubr.f32.gmra.mrb[0].mxu0 %v22
    %v116 = vpop.f32.mrb[0].mxu0
    %v117 = vadd.f32 0.0, %v116
    %v118 = vpop.f32.mrb[0].mxu0
    %119 = vmatprep.mubr.f32.mxu0 0.0
    %120 = vmatmul.mubr.f32.gmra.mrb[0].mxu0 %v23
    %v121 = vpop.f32.mrb[0].mxu0
    %v122 = vadd.f32 0.0, %v121
    %v123 = vpop.f32.mrb[0].mxu0
    %124 = vmatprep.mubr.f32.mxu0 0.0
    %125 = vmatmul.mubr.f32.gmra.mrb[0].mxu0 %v24
    %v126 = vpop.f32.mrb[0].mxu0
    %v127 = vadd.f32 0.0, %v126
    %v128 = vpop.f32.mrb[0].mxu0
    %129 = vmatprep.mubr.f32.mxu0 0.0
    %130 = vmatmul.mubr.f32.gmra.mrb[0].mxu0 %v25
    %v131 = vpop.f32.mrb[0].mxu0
    %v132 = vadd.f32 0.0, %v131
    %v133 = vpop.f32.mrb[0].mxu0
    %134 = vmatprep.mubr.f32.mxu0 0.0
    %135 = vmatmul.mubr.f32.gmra.mrb[0].mxu0 %v26
    %v136 = vpop.f32.mrb[0].mxu0
    %v137 = vadd.f32 0.0, %v136
    %v138 = vpop.f32.mrb[0].mxu0
    %139 = vmatprep.mubr.f32.mxu0 0.0
    %140 = vmatmul.mubr.f32.gmra.mrb[0].mxu0 %v27
    %v141 = vpop.f32.mrb[0].mxu0
    %v142 = vadd.f32 0.0, %v141
    %v143 = vpop.f32.mrb[0].mxu0
    %144 = vmatprep.mubr.f32.mxu0 0.0
    %145 = vmatmul.mubr.f32.gmra.mrb[0].mxu0 %v28
    %v146 = vpop.f32.mrb[0].mxu0
    %v147 = vadd.f32 0.0, %v146
    %v148 = vpop.f32.mrb[0].mxu0
    %149 = vdwg.mxu0
    %v150 = vld [vmem:[%s2] sm:$0xff]
    %v151 = vld [vmem:[%s2 + $0x8] sm:$0xff]
    %v152 = vld [vmem:[%s2 + $0x10] sm:$0xff]
    %v153 = vld [vmem:[%s2 + $0x18] sm:$0xff]
    %vm154 = vcmask 261120
    %v156 = vsel %vm154, 0.0, 0
    %158 = vmatprep.subr.mxu0 0.0
    %159 = vmatpush1.msra.mxu0 %v150
    %160 = vmatprep.subr.mxu0 0.0
    %161 = vmatpush1.msra.mxu0 %v151
    %162 = vmatprep.subr.mxu0 0.0
    %163 = vmatpush1.msra.mxu0 %v152
    %164 = vmatprep.subr.mxu0 0.0
    %165 = vmatpush1.msra.mxu0 %v153
    %166 = vmatprep.subr.mxu0 0.0
    %167 = vmatpush1.msra.mxu0 0.0
    %168 = vmatprep.subr.mxu0 0.0
    %169 = vmatpush1.msra.mxu0 0.0
    %170 = vmatprep.subr.mxu0 0.0
    %171 = vmatpush1.msra.mxu0 0.0
    %172 = vmatprep.subr.mxu0 0.0
    %173 = vmatpush1.msra.mxu0 0.0
    %174 = vmatprep.subr.mxu0 0.0
    %175 = vmatpush1.msra.mxu0 0.0
    %176 = vmatprep.subr.mxu0 0.0
    %177 = vmatpush1.msra.mxu0 0.0
    %178 = vmatprep.subr.mxu0 0.0
    %179 = vmatpush1.msra.mxu0 0.0
    %180 = vmatprep.subr.mxu0 0.0
    %181 = vmatpush1.msra.mxu0 0.0
    %182 = vmatprep.subr.mxu0 0.0
    %183 = vmatpush1.msra.mxu0 0.0
    %184 = vmatprep.subr.mxu0 0.0
    %185 = vmatpush1.msra.mxu0 0.0
    %186 = vmatprep.subr.mxu0 0.0
    %187 = vmatpush1.msra.mxu0 0.0
    %188 = vmatprep.subr.mxu0 0.0
    %189 = vmatpush1.msra.mxu0 0.0
    %190 = vmatprep.subr.mxu0 0.0
    %191 = vmatpush1.msra.mxu0 0.0
    %192 = vmatprep.subr.mxu0 0.0
    %193 = vmatpush1.msra.mxu0 0.0
    %194 = vmatprep.subr.mxu0 0.0
    %195 = vmatpush1.msra.mxu0 0.0
    %196 = vmatprep.subr.mxu0 0.0
    %197 = vmatpush1.msra.mxu0 0.0
    %198 = vmatprep.subr.mxu0 0.0
    %199 = vmatpush1.msra.mxu0 0.0
    %200 = vmatprep.subr.mxu0 0.0
    %201 = vmatpush1.msra.mxu0 0.0
    %202 = vmatprep.subr.mxu0 0.0
    %203 = vmatpush1.msra.mxu0 0.0
    %204 = vmatprep.subr.mxu0 0.0
    %205 = vmatpush1.msra.mxu0 0.0
    %206 = vmatprep.subr.mxu0 0.0
    %207 = vmatpush1.msra.mxu0 0.0
    %208 = vmatprep.subr.mxu0 0.0
    %209 = vmatpush1.msra.mxu0 0.0
    %210 = vmatprep.subr.mxu0 0.0
    %211 = vmatpush1.msra.mxu0 0.0
    %212 = vmatprep.subr.mxu0 0.0
    %213 = vmatpush1.msra.mxu0 0.0
    %214 = vmatprep.subr.mxu0 0.0
    %215 = vmatpush1.msra.mxu0 0.0
    %216 = vmatprep.subr.mxu0 0.0
    %217 = vmatpush1.msra.mxu0 0.0
    %218 = vmatprep.subr.mxu0 0.0
    %219 = vmatpush1.msra.mxu0 0.0
    %220 = vmatprep.subr.mxu0 0.0
    %221 = vmatpush1.msra.mxu0 0.0
    %222 = vmatprep.mubr.f32.mxu0 0.0
    %223 = vmatmul.mubr.f32.gmra.mrb[0].mxu0 %v156
    %v224 = vpop.f32.mrb[0].mxu0
    %v225 = vadd.f32 0.0, %v224
    %v226 = vpop.f32.mrb[0].mxu0
    %227 = vdwg.mxu0
    %v228 = vadd.f32 %v112, %v225
    %v229 = vtanh.pop %v228
    %v231 = vsel %vm154, %v229, 0
    %233 = vmatprep.subr.mxu0 0.0
    %234 = vmatpush1.msra.mxu0 %v150
    %235 = vmatprep.subr.mxu0 0.0
    %236 = vmatpush1.msra.mxu0 %v151
    %237 = vmatprep.subr.mxu0 0.0
    %238 = vmatpush1.msra.mxu0 %v152
    %239 = vmatprep.subr.mxu0 0.0
    %240 = vmatpush1.msra.mxu0 %v153
    %241 = vmatprep.subr.mxu0 0.0
    %242 = vmatpush1.msra.mxu0 0.0
    %243 = vmatprep.subr.mxu0 0.0
    %244 = vmatpush1.msra.mxu0 0.0
    %245 = vmatprep.subr.mxu0 0.0
    %246 = vmatpush1.msra.mxu0 0.0
    %247 = vmatprep.subr.mxu0 0.0
    %248 = vmatpush1.msra.mxu0 0.0
    %249 = vmatprep.subr.mxu0 0.0
    %250 = vmatpush1.msra.mxu0 0.0
    %251 = vmatprep.subr.mxu0 0.0
    %252 = vmatpush1.msra.mxu0 0.0
    %253 = vmatprep.subr.mxu0 0.0
    %254 = vmatpush1.msra.mxu0 0.0
    %255 = vmatprep.subr.mxu0 0.0
    %256 = vmatpush1.msra.mxu0 0.0
    %257 = vmatprep.subr.mxu0 0.0
    %258 = vmatpush1.msra.mxu0 0.0
    %259 = vmatprep.subr.mxu0 0.0
    %260 = vmatpush1.msra.mxu0 0.0
    %261 = vmatprep.subr.mxu0 0.0
    %262 = vmatpush1.msra.mxu0 0.0
    %263 = vmatprep.subr.mxu0 0.0
    %264 = vmatpush1.msra.mxu0 0.0
    %265 = vmatprep.subr.mxu0 0.0
    %266 = vmatpush1.msra.mxu0 0.0
    %267 = vmatprep.subr.mxu0 0.0
    %268 = vmatpush1.msra.mxu0 0.0
    %269 = vmatprep.subr.mxu0 0.0
    %270 = vmatpush1.msra.mxu0 0.0
    %271 = vmatprep.subr.mxu0 0.0
    %272 = vmatpush1.msra.mxu0 0.0
    %273 = vmatprep.subr.mxu0 0.0
    %274 = vmatpush1.msra.mxu0 0.0
    %275 = vmatprep.subr.mxu0 0.0
    %276 = vmatpush1.msra.mxu0 0.0
    %277 = vmatprep.subr.mxu0 0.0
    %278 = vmatpush1.msra.mxu0 0.0
    %279 = vmatprep.subr.mxu0 0.0
    %280 = vmatpush1.msra.mxu0 0.0
    %281 = vmatprep.subr.mxu0 0.0
    %282 = vmatpush1.msra.mxu0 0.0
    %283 = vmatprep.subr.mxu0 0.0
    %284 = vmatpush1.msra.mxu0 0.0
    %285 = vmatprep.subr.mxu0 0.0
    %286 = vmatpush1.msra.mxu0 0.0
    %287 = vmatprep.subr.mxu0 0.0
    %288 = vmatpush1.msra.mxu0 0.0
    %289 = vmatprep.subr.mxu0 0.0
    %290 = vmatpush1.msra.mxu0 0.0
    %291 = vmatprep.subr.mxu0 0.0
    %292 = vmatpush1.msra.mxu0 0.0
    %293 = vmatprep.subr.mxu0 0.0
    %294 = vmatpush1.msra.mxu0 0.0
    %295 = vmatprep.subr.mxu0 0.0
    %296 = vmatpush1.msra.mxu0 0.0
    %297 = vmatprep.mubr.f32.mxu0 0.0
    %298 = vmatmul.mubr.f32.gmra.mrb[0].mxu0 %v231
    %v299 = vpop.f32.mrb[0].mxu0
    %v300 = vadd.f32 0.0, %v299
    %v301 = vpop.f32.mrb[0].mxu0
    %302 = vdwg.mxu0
    %v303 = vadd.f32 %v117, %v300
    %v304 = vtanh.pop %v303
    %v306 = vsel %vm154, %v304, 0
    %308 = vmatprep.subr.mxu0 0.0
    %309 = vmatpush1.msra.mxu0 %v150
    %310 = vmatprep.subr.mxu0 0.0
    %311 = vmatpush1.msra.mxu0 %v151
    %312 = vmatprep.subr.mxu0 0.0
    %313 = vmatpush1.msra.mxu0 %v152
    %314 = vmatprep.subr.mxu0 0.0
    %315 = vmatpush1.msra.mxu0 %v153
    %316 = vmatprep.subr.mxu0 0.0
    %317 = vmatpush1.msra.mxu0 0.0
    %318 = vmatprep.subr.mxu0 0.0
    %319 = vmatpush1.msra.mxu0 0.0
    %320 = vmatprep.subr.mxu0 0.0
    %321 = vmatpush1.msra.mxu0 0.0
    %322 = vmatprep.subr.mxu0 0.0
    %323 = vmatpush1.msra.mxu0 0.0
    %324 = vmatprep.subr.mxu0 0.0
    %325 = vmatpush1.msra.mxu0 0.0
    %326 = vmatprep.subr.mxu0 0.0
    %327 = vmatpush1.msra.mxu0 0.0
    %328 = vmatprep.subr.mxu0 0.0
    %329 = vmatpush1.msra.mxu0 0.0
    %330 = vmatprep.subr.mxu0 0.0
    %331 = vmatpush1.msra.mxu0 0.0
    %332 = vmatprep.subr.mxu0 0.0
    %333 = vmatpush1.msra.mxu0 0.0
    %334 = vmatprep.subr.mxu0 0.0
    %335 = vmatpush1.msra.mxu0 0.0
    %336 = vmatprep.subr.mxu0 0.0
    %337 = vmatpush1.msra.mxu0 0.0
    %338 = vmatprep.subr.mxu0 0.0
    %339 = vmatpush1.msra.mxu0 0.0
    %340 = vmatprep.subr.mxu0 0.0
    %341 = vmatpush1.msra.mxu0 0.0
    %342 = vmatprep.subr.mxu0 0.0
    %343 = vmatpush1.msra.mxu0 0.0
    %344 = vmatprep.subr.mxu0 0.0
    %345 = vmatpush1.msra.mxu0 0.0
    %346 = vmatprep.subr.mxu0 0.0
    %347 = vmatpush1.msra.mxu0 0.0
    %348 = vmatprep.subr.mxu0 0.0
    %349 = vmatpush1.msra.mxu0 0.0
    %350 = vmatprep.subr.mxu0 0.0
    %351 = vmatpush1.msra.mxu0 0.0
    %352 = vmatprep.subr.mxu0 0.0
    %353 = vmatpush1.msra.mxu0 0.0
    %354 = vmatprep.subr.mxu0 0.0
    %355 = vmatpush1.msra.mxu0 0.0
    %356 = vmatprep.subr.mxu0 0.0
    %357 = vmatpush1.msra.mxu0 0.0
    %358 = vmatprep.subr.mxu0 0.0
    %359 = vmatpush1.msra.mxu0 0.0
    %360 = vmatprep.subr.mxu0 0.0
    %361 = vmatpush1.msra.mxu0 0.0
    %362 = vmatprep.subr.mxu0 0.0
    %363 = vmatpush1.msra.mxu0 0.0
    %364 = vmatprep.subr.mxu0 0.0
    %365 = vmatpush1.msra.mxu0 0.0
    %366 = vmatprep.subr.mxu0 0.0
    %367 = vmatpush1.msra.mxu0 0.0
    %368 = vmatprep.subr.mxu0 0.0
    %369 = vmatpush1.msra.mxu0 0.0
    %370 = vmatprep.subr.mxu0 0.0
    %371 = vmatpush1.msra.mxu0 0.0
    %372 = vmatprep.mubr.f32.mxu0 0.0
    %373 = vmatmul.mubr.f32.gmra.mrb[0].mxu0 %v306
    %v374 = vpop.f32.mrb[0].mxu0
    %v375 = vadd.f32 0.0, %v374
    %v376 = vpop.f32.mrb[0].mxu0
    %377 = vdwg.mxu0
    %v378 = vadd.f32 %v122, %v375
    %v379 = vtanh.pop %v378
    %v381 = vsel %vm154, %v379, 0
    %383 = vmatprep.subr.mxu0 0.0
    %384 = vmatpush1.msra.mxu0 %v150
    %385 = vmatprep.subr.mxu0 0.0
    %386 = vmatpush1.msra.mxu0 %v151
    %387 = vmatprep.subr.mxu0 0.0
    %388 = vmatpush1.msra.mxu0 %v152
    %389 = vmatprep.subr.mxu0 0.0
    %390 = vmatpush1.msra.mxu0 %v153
    %391 = vmatprep.subr.mxu0 0.0
    %392 = vmatpush1.msra.mxu0 0.0
    %393 = vmatprep.subr.mxu0 0.0
    %394 = vmatpush1.msra.mxu0 0.0
    %395 = vmatprep.subr.mxu0 0.0
    %396 = vmatpush1.msra.mxu0 0.0
    %397 = vmatprep.subr.mxu0 0.0
    %398 = vmatpush1.msra.mxu0 0.0
    %399 = vmatprep.subr.mxu0 0.0
    %400 = vmatpush1.msra.mxu0 0.0
    %401 = vmatprep.subr.mxu0 0.0
    %402 = vmatpush1.msra.mxu0 0.0
    %403 = vmatprep.subr.mxu0 0.0
    %404 = vmatpush1.msra.mxu0 0.0
    %405 = vmatprep.subr.mxu0 0.0
    %406 = vmatpush1.msra.mxu0 0.0
    %407 = vmatprep.subr.mxu0 0.0
    %408 = vmatpush1.msra.mxu0 0.0
    %409 = vmatprep.subr.mxu0 0.0
    %410 = vmatpush1.msra.mxu0 0.0
    %411 = vmatprep.subr.mxu0 0.0
    %412 = vmatpush1.msra.mxu0 0.0
    %413 = vmatprep.subr.mxu0 0.0
    %414 = vmatpush1.msra.mxu0 0.0
    %415 = vmatprep.subr.mxu0 0.0
    %416 = vmatpush1.msra.mxu0 0.0
    %417 = vmatprep.subr.mxu0 0.0
    %418 = vmatpush1.msra.mxu0 0.0
    %419 = vmatprep.subr.mxu0 0.0
    %420 = vmatpush1.msra.mxu0 0.0
    %421 = vmatprep.subr.mxu0 0.0
    %422 = vmatpush1.msra.mxu0 0.0
    %423 = vmatprep.subr.mxu0 0.0
    %424 = vmatpush1.msra.mxu0 0.0
    %425 = vmatprep.subr.mxu0 0.0
    %426 = vmatpush1.msra.mxu0 0.0
    %427 = vmatprep.subr.mxu0 0.0
    %428 = vmatpush1.msra.mxu0 0.0
    %429 = vmatprep.subr.mxu0 0.0
    %430 = vmatpush1.msra.mxu0 0.0
    %431 = vmatprep.subr.mxu0 0.0
    %432 = vmatpush1.msra.mxu0 0.0
    %433 = vmatprep.subr.mxu0 0.0
    %434 = vmatpush1.msra.mxu0 0.0
    %435 = vmatprep.subr.mxu0 0.0
    %436 = vmatpush1.msra.mxu0 0.0
    %437 = vmatprep.subr.mxu0 0.0
    %438 = vmatpush1.msra.mxu0 0.0
    %439 = vmatprep.subr.mxu0 0.0
    %440 = vmatpush1.msra.mxu0 0.0
    %441 = vmatprep.subr.mxu0 0.0
    %442 = vmatpush1.msra.mxu0 0.0
    %443 = vmatprep.subr.mxu0 0.0
    %444 = vmatpush1.msra.mxu0 0.0
    %445 = vmatprep.subr.mxu0 0.0
    %446 = vmatpush1.msra.mxu0 0.0
    %447 = vmatprep.mubr.f32.mxu0 0.0
    %448 = vmatmul.mubr.f32.gmra.mrb[0].mxu0 %v381
    %v449 = vpop.f32.mrb[0].mxu0
    %v450 = vadd.f32 0.0, %v449
    %v451 = vpop.f32.mrb[0].mxu0
    %452 = vdwg.mxu0
    %v453 = vadd.f32 %v127, %v450
    %v454 = vtanh.pop %v453
    %v456 = vsel %vm154, %v454, 0
    %458 = vmatprep.subr.mxu0 0.0
    %459 = vmatpush1.msra.mxu0 %v150
    %460 = vmatprep.subr.mxu0 0.0
    %461 = vmatpush1.msra.mxu0 %v151
    %462 = vmatprep.subr.mxu0 0.0
    %463 = vmatpush1.msra.mxu0 %v152
    %464 = vmatprep.subr.mxu0 0.0
    %465 = vmatpush1.msra.mxu0 %v153
    %466 = vmatprep.subr.mxu0 0.0
    %467 = vmatpush1.msra.mxu0 0.0
    %468 = vmatprep.subr.mxu0 0.0
    %469 = vmatpush1.msra.mxu0 0.0
    %470 = vmatprep.subr.mxu0 0.0
    %471 = vmatpush1.msra.mxu0 0.0
    %472 = vmatprep.subr.mxu0 0.0
    %473 = vmatpush1.msra.mxu0 0.0
    %474 = vmatprep.subr.mxu0 0.0
    %475 = vmatpush1.msra.mxu0 0.0
    %476 = vmatprep.subr.mxu0 0.0
    %477 = vmatpush1.msra.mxu0 0.0
    %478 = vmatprep.subr.mxu0 0.0
    %479 = vmatpush1.msra.mxu0 0.0
    %480 = vmatprep.subr.mxu0 0.0
    %481 = vmatpush1.msra.mxu0 0.0
    %482 = vmatprep.subr.mxu0 0.0
    %483 = vmatpush1.msra.mxu0 0.0
    %484 = vmatprep.subr.mxu0 0.0
    %485 = vmatpush1.msra.mxu0 0.0
    %486 = vmatprep.subr.mxu0 0.0
    %487 = vmatpush1.msra.mxu0 0.0
    %488 = vmatprep.subr.mxu0 0.0
    %489 = vmatpush1.msra.mxu0 0.0
    %490 = vmatprep.subr.mxu0 0.0
    %491 = vmatpush1.msra.mxu0 0.0
    %492 = vmatprep.subr.mxu0 0.0
    %493 = vmatpush1.msra.mxu0 0.0
    %494 = vmatprep.subr.mxu0 0.0
    %495 = vmatpush1.msra.mxu0 0.0
    %496 = vmatprep.subr.mxu0 0.0
    %497 = vmatpush1.msra.mxu0 0.0
    %498 = vmatprep.subr.mxu0 0.0
    %499 = vmatpush1.msra.mxu0 0.0
    %500 = vmatprep.subr.mxu0 0.0
    %501 = vmatpush1.msra.mxu0 0.0
    %502 = vmatprep.subr.mxu0 0.0
    %503 = vmatpush1.msra.mxu0 0.0
    %504 = vmatprep.subr.mxu0 0.0
    %505 = vmatpush1.msra.mxu0 0.0
    %506 = vmatprep.subr.mxu0 0.0
    %507 = vmatpush1.msra.mxu0 0.0
    %508 = vmatprep.subr.mxu0 0.0
    %509 = vmatpush1.msra.mxu0 0.0
    %510 = vmatprep.subr.mxu0 0.0
    %511 = vmatpush1.msra.mxu0 0.0
    %512 = vmatprep.subr.mxu0 0.0
    %513 = vmatpush1.msra.mxu0 0.0
    %514 = vmatprep.subr.mxu0 0.0
    %515 = vmatpush1.msra.mxu0 0.0
    %516 = vmatprep.subr.mxu0 0.0
    %517 = vmatpush1.msra.mxu0 0.0
    %518 = vmatprep.subr.mxu0 0.0
    %519 = vmatpush1.msra.mxu0 0.0
    %520 = vmatprep.subr.mxu0 0.0
    %521 = vmatpush1.msra.mxu0 0.0
    %522 = vmatprep.mubr.f32.mxu0 0.0
    %523 = vmatmul.mubr.f32.gmra.mrb[0].mxu0 %v456
    %v524 = vpop.f32.mrb[0].mxu0
    %v525 = vadd.f32 0.0, %v524
    %v526 = vpop.f32.mrb[0].mxu0
    %527 = vdwg.mxu0
    %v528 = vadd.f32 %v132, %v525
    %v529 = vtanh.pop %v528
    %v531 = vsel %vm154, %v529, 0
    %533 = vmatprep.subr.mxu0 0.0
    %534 = vmatpush1.msra.mxu0 %v150
    %535 = vmatprep.subr.mxu0 0.0
    %536 = vmatpush1.msra.mxu0 %v151
    %537 = vmatprep.subr.mxu0 0.0
    %538 = vmatpush1.msra.mxu0 %v152
    %539 = vmatprep.subr.mxu0 0.0
    %540 = vmatpush1.msra.mxu0 %v153
    %541 = vmatprep.subr.mxu0 0.0
    %542 = vmatpush1.msra.mxu0 0.0
    %543 = vmatprep.subr.mxu0 0.0
    %544 = vmatpush1.msra.mxu0 0.0
    %545 = vmatprep.subr.mxu0 0.0
    %546 = vmatpush1.msra.mxu0 0.0
    %547 = vmatprep.subr.mxu0 0.0
    %548 = vmatpush1.msra.mxu0 0.0
    %549 = vmatprep.subr.mxu0 0.0
    %550 = vmatpush1.msra.mxu0 0.0
    %551 = vmatprep.subr.mxu0 0.0
    %552 = vmatpush1.msra.mxu0 0.0
    %553 = vmatprep.subr.mxu0 0.0
    %554 = vmatpush1.msra.mxu0 0.0
    %555 = vmatprep.subr.mxu0 0.0
    %556 = vmatpush1.msra.mxu0 0.0
    %557 = vmatprep.subr.mxu0 0.0
    %558 = vmatpush1.msra.mxu0 0.0
    %559 = vmatprep.subr.mxu0 0.0
    %560 = vmatpush1.msra.mxu0 0.0
    %561 = vmatprep.subr.mxu0 0.0
    %562 = vmatpush1.msra.mxu0 0.0
    %563 = vmatprep.subr.mxu0 0.0
    %564 = vmatpush1.msra.mxu0 0.0
    %565 = vmatprep.subr.mxu0 0.0
    %566 = vmatpush1.msra.mxu0 0.0
    %567 = vmatprep.subr.mxu0 0.0
    %568 = vmatpush1.msra.mxu0 0.0
    %569 = vmatprep.subr.mxu0 0.0
    %570 = vmatpush1.msra.mxu0 0.0
    %571 = vmatprep.subr.mxu0 0.0
    %572 = vmatpush1.msra.mxu0 0.0
    %573 = vmatprep.subr.mxu0 0.0
    %574 = vmatpush1.msra.mxu0 0.0
    %575 = vmatprep.subr.mxu0 0.0
    %576 = vmatpush1.msra.mxu0 0.0
    %577 = vmatprep.subr.mxu0 0.0
    %578 = vmatpush1.msra.mxu0 0.0
    %579 = vmatprep.subr.mxu0 0.0
    %580 = vmatpush1.msra.mxu0 0.0
    %581 = vmatprep.subr.mxu0 0.0
    %582 = vmatpush1.msra.mxu0 0.0
    %583 = vmatprep.subr.mxu0 0.0
    %584 = vmatpush1.msra.mxu0 0.0
    %585 = vmatprep.subr.mxu0 0.0
    %586 = vmatpush1.msra.mxu0 0.0
    %587 = vmatprep.subr.mxu0 0.0
    %588 = vmatpush1.msra.mxu0 0.0
    %589 = vmatprep.subr.mxu0 0.0
    %590 = vmatpush1.msra.mxu0 0.0
    %591 = vmatprep.subr.mxu0 0.0
    %592 = vmatpush1.msra.mxu0 0.0
    %593 = vmatprep.subr.mxu0 0.0
    %594 = vmatpush1.msra.mxu0 0.0
    %595 = vmatprep.subr.mxu0 0.0
    %596 = vmatpush1.msra.mxu0 0.0
    %597 = vmatprep.mubr.f32.mxu0 0.0
    %598 = vmatmul.mubr.f32.gmra.mrb[0].mxu0 %v531
    %v599 = vpop.f32.mrb[0].mxu0
    %v600 = vadd.f32 0.0, %v599
    %v601 = vpop.f32.mrb[0].mxu0
    %602 = vdwg.mxu0
    %v603 = vadd.f32 %v137, %v600
    %v604 = vtanh.pop %v603
    %v606 = vsel %vm154, %v604, 0
    %608 = vmatprep.subr.mxu0 0.0
    %609 = vmatpush1.msra.mxu0 %v150
    %610 = vmatprep.subr.mxu0 0.0
    %611 = vmatpush1.msra.mxu0 %v151
    %612 = vmatprep.subr.mxu0 0.0
    %613 = vmatpush1.msra.mxu0 %v152
    %614 = vmatprep.subr.mxu0 0.0
    %615 = vmatpush1.msra.mxu0 %v153
    %616 = vmatprep.subr.mxu0 0.0
    %617 = vmatpush1.msra.mxu0 0.0
    %618 = vmatprep.subr.mxu0 0.0
    %619 = vmatpush1.msra.mxu0 0.0
    %620 = vmatprep.subr.mxu0 0.0
    %621 = vmatpush1.msra.mxu0 0.0
    %622 = vmatprep.subr.mxu0 0.0
    %623 = vmatpush1.msra.mxu0 0.0
    %624 = vmatprep.subr.mxu0 0.0
    %625 = vmatpush1.msra.mxu0 0.0
    %626 = vmatprep.subr.mxu0 0.0
    %627 = vmatpush1.msra.mxu0 0.0
    %628 = vmatprep.subr.mxu0 0.0
    %629 = vmatpush1.msra.mxu0 0.0
    %630 = vmatprep.subr.mxu0 0.0
    %631 = vmatpush1.msra.mxu0 0.0
    %632 = vmatprep.subr.mxu0 0.0
    %633 = vmatpush1.msra.mxu0 0.0
    %634 = vmatprep.subr.mxu0 0.0
    %635 = vmatpush1.msra.mxu0 0.0
    %636 = vmatprep.subr.mxu0 0.0
    %637 = vmatpush1.msra.mxu0 0.0
    %638 = vmatprep.subr.mxu0 0.0
    %639 = vmatpush1.msra.mxu0 0.0
    %640 = vmatprep.subr.mxu0 0.0
    %641 = vmatpush1.msra.mxu0 0.0
    %642 = vmatprep.subr.mxu0 0.0
    %643 = vmatpush1.msra.mxu0 0.0
    %644 = vmatprep.subr.mxu0 0.0
    %645 = vmatpush1.msra.mxu0 0.0
    %646 = vmatprep.subr.mxu0 0.0
    %647 = vmatpush1.msra.mxu0 0.0
    %648 = vmatprep.subr.mxu0 0.0
    %649 = vmatpush1.msra.mxu0 0.0
    %650 = vmatprep.subr.mxu0 0.0
    %651 = vmatpush1.msra.mxu0 0.0
    %652 = vmatprep.subr.mxu0 0.0
    %653 = vmatpush1.msra.mxu0 0.0
    %654 = vmatprep.subr.mxu0 0.0
    %655 = vmatpush1.msra.mxu0 0.0
    %656 = vmatprep.subr.mxu0 0.0
    %657 = vmatpush1.msra.mxu0 0.0
    %658 = vmatprep.subr.mxu0 0.0
    %659 = vmatpush1.msra.mxu0 0.0
    %660 = vmatprep.subr.mxu0 0.0
    %661 = vmatpush1.msra.mxu0 0.0
    %662 = vmatprep.subr.mxu0 0.0
    %663 = vmatpush1.msra.mxu0 0.0
    %664 = vmatprep.subr.mxu0 0.0
    %665 = vmatpush1.msra.mxu0 0.0
    %666 = vmatprep.subr.mxu0 0.0
    %667 = vmatpush1.msra.mxu0 0.0
    %668 = vmatprep.subr.mxu0 0.0
    %669 = vmatpush1.msra.mxu0 0.0
    %670 = vmatprep.subr.mxu0 0.0
    %671 = vmatpush1.msra.mxu0 0.0
    %672 = vmatprep.mubr.f32.mxu0 0.0
    %673 = vmatmul.mubr.f32.gmra.mrb[0].mxu0 %v606
    %v674 = vpop.f32.mrb[0].mxu0
    %v675 = vadd.f32 0.0, %v674
    %v676 = vpop.f32.mrb[0].mxu0
    %677 = vdwg.mxu0
    %v678 = vadd.f32 %v142, %v675
    %v679 = vtanh.pop %v678
    %v681 = vsel %vm154, %v679, 0
    %683 = vmatprep.subr.mxu0 0.0
    %684 = vmatpush1.msra.mxu0 %v150
    %685 = vmatprep.subr.mxu0 0.0
    %686 = vmatpush1.msra.mxu0 %v151
    %687 = vmatprep.subr.mxu0 0.0
    %688 = vmatpush1.msra.mxu0 %v152
    %689 = vmatprep.subr.mxu0 0.0
    %690 = vmatpush1.msra.mxu0 %v153
    %691 = vmatprep.subr.mxu0 0.0
    %692 = vmatpush1.msra.mxu0 0.0
    %693 = vmatprep.subr.mxu0 0.0
    %694 = vmatpush1.msra.mxu0 0.0
    %695 = vmatprep.subr.mxu0 0.0
    %696 = vmatpush1.msra.mxu0 0.0
    %697 = vmatprep.subr.mxu0 0.0
    %698 = vmatpush1.msra.mxu0 0.0
    %699 = vmatprep.subr.mxu0 0.0
    %700 = vmatpush1.msra.mxu0 0.0
    %701 = vmatprep.subr.mxu0 0.0
    %702 = vmatpush1.msra.mxu0 0.0
    %703 = vmatprep.subr.mxu0 0.0
    %704 = vmatpush1.msra.mxu0 0.0
    %705 = vmatprep.subr.mxu0 0.0
    %706 = vmatpush1.msra.mxu0 0.0
    %707 = vmatprep.subr.mxu0 0.0
    %708 = vmatpush1.msra.mxu0 0.0
    %709 = vmatprep.subr.mxu0 0.0
    %710 = vmatpush1.msra.mxu0 0.0
    %711 = vmatprep.subr.mxu0 0.0
    %712 = vmatpush1.msra.mxu0 0.0
    %713 = vmatprep.subr.mxu0 0.0
    %714 = vmatpush1.msra.mxu0 0.0
    %715 = vmatprep.subr.mxu0 0.0
    %716 = vmatpush1.msra.mxu0 0.0
    %717 = vmatprep.subr.mxu0 0.0
    %718 = vmatpush1.msra.mxu0 0.0
    %719 = vmatprep.subr.mxu0 0.0
    %720 = vmatpush1.msra.mxu0 0.0
    %721 = vmatprep.subr.mxu0 0.0
    %722 = vmatpush1.msra.mxu0 0.0
    %723 = vmatprep.subr.mxu0 0.0
    %724 = vmatpush1.msra.mxu0 0.0
    %725 = vmatprep.subr.mxu0 0.0
    %726 = vmatpush1.msra.mxu0 0.0
    %727 = vmatprep.subr.mxu0 0.0
    %728 = vmatpush1.msra.mxu0 0.0
    %729 = vmatprep.subr.mxu0 0.0
    %730 = vmatpush1.msra.mxu0 0.0
    %731 = vmatprep.subr.mxu0 0.0
    %732 = vmatpush1.msra.mxu0 0.0
    %733 = vmatprep.subr.mxu0 0.0
    %734 = vmatpush1.msra.mxu0 0.0
    %735 = vmatprep.subr.mxu0 0.0
    %736 = vmatpush1.msra.mxu0 0.0
    %737 = vmatprep.subr.mxu0 0.0
    %738 = vmatpush1.msra.mxu0 0.0
    %739 = vmatprep.subr.mxu0 0.0
    %740 = vmatpush1.msra.mxu0 0.0
    %741 = vmatprep.subr.mxu0 0.0
    %742 = vmatpush1.msra.mxu0 0.0
    %743 = vmatprep.subr.mxu0 0.0
    %744 = vmatpush1.msra.mxu0 0.0
    %745 = vmatprep.subr.mxu0 0.0
    %746 = vmatpush1.msra.mxu0 0.0
    %747 = vmatprep.mubr.f32.mxu0 0.0
    %748 = vmatmul.mubr.f32.gmra.mrb[0].mxu0 %v681
    %v749 = vpop.f32.mrb[0].mxu0
    %v750 = vadd.f32 0.0, %v749
    %v751 = vpop.f32.mrb[0].mxu0
    %752 = vdwg.mxu0
    %v753 = vadd.f32 %v147, %v750
    %v754 = vtanh.pop %v753
    %v755 = vld [vmem:[%s3] sm:$0xff]
    %v756 = vld [vmem:[%s3 + $0x8] sm:$0xff]
    %v757 = vld [vmem:[%s3 + $0x10] sm:$0xff]
    %v758 = vld [vmem:[%s3 + $0x18] sm:$0xff]
    %v759 = vld [vmem:[%s4] sm:$0x1]
    %v761 = vlaneseq
    %v762 = vshrl.u32 %v761, 7
    %v763 = vsub.s32 0, %v762
    %v764 = vrot.slane %v759, %v763
    %v767 = vsel %vm154, %v754, 0
    %769 = vmatprep.subr.mxu0 0.0
    %770 = vmatpush1.msra.mxu0 %v755
    %771 = vmatprep.subr.mxu0 0.0
    %772 = vmatpush1.msra.mxu0 %v756
    %773 = vmatprep.subr.mxu0 0.0
    %774 = vmatpush1.msra.mxu0 %v757
    %775 = vmatprep.subr.mxu0 0.0
    %776 = vmatpush1.msra.mxu0 %v758
    %777 = vmatprep.subr.mxu0 0.0
    %778 = vmatpush1.msra.mxu0 0.0
    %779 = vmatprep.subr.mxu0 0.0
    %780 = vmatpush1.msra.mxu0 0.0
    %781 = vmatprep.subr.mxu0 0.0
    %782 = vmatpush1.msra.mxu0 0.0
    %783 = vmatprep.subr.mxu0 0.0
    %784 = vmatpush1.msra.mxu0 0.0
    %785 = vmatprep.subr.mxu0 0.0
    %786 = vmatpush1.msra.mxu0 0.0
    %787 = vmatprep.subr.mxu0 0.0
    %788 = vmatpush1.msra.mxu0 0.0
    %789 = vmatprep.subr.mxu0 0.0
    %790 = vmatpush1.msra.mxu0 0.0
    %791 = vmatprep.subr.mxu0 0.0
    %792 = vmatpush1.msra.mxu0 0.0
    %793 = vmatprep.subr.mxu0 0.0
    %794 = vmatpush1.msra.mxu0 0.0
    %795 = vmatprep.subr.mxu0 0.0
    %796 = vmatpush1.msra.mxu0 0.0
    %797 = vmatprep.subr.mxu0 0.0
    %798 = vmatpush1.msra.mxu0 0.0
    %799 = vmatprep.subr.mxu0 0.0
    %800 = vmatpush1.msra.mxu0 0.0
    %801 = vmatprep.subr.mxu0 0.0
    %802 = vmatpush1.msra.mxu0 0.0
    %803 = vmatprep.subr.mxu0 0.0
    %804 = vmatpush1.msra.mxu0 0.0
    %805 = vmatprep.subr.mxu0 0.0
    %806 = vmatpush1.msra.mxu0 0.0
    %807 = vmatprep.subr.mxu0 0.0
    %808 = vmatpush1.msra.mxu0 0.0
    %809 = vmatprep.subr.mxu0 0.0
    %810 = vmatpush1.msra.mxu0 0.0
    %811 = vmatprep.subr.mxu0 0.0
    %812 = vmatpush1.msra.mxu0 0.0
    %813 = vmatprep.subr.mxu0 0.0
    %814 = vmatpush1.msra.mxu0 0.0
    %815 = vmatprep.subr.mxu0 0.0
    %816 = vmatpush1.msra.mxu0 0.0
    %817 = vmatprep.subr.mxu0 0.0
    %818 = vmatpush1.msra.mxu0 0.0
    %819 = vmatprep.subr.mxu0 0.0
    %820 = vmatpush1.msra.mxu0 0.0
    %821 = vmatprep.subr.mxu0 0.0
    %822 = vmatpush1.msra.mxu0 0.0
    %823 = vmatprep.subr.mxu0 0.0
    %824 = vmatpush1.msra.mxu0 0.0
    %825 = vmatprep.subr.mxu0 0.0
    %826 = vmatpush1.msra.mxu0 0.0
    %827 = vmatprep.subr.mxu0 0.0
    %828 = vmatpush1.msra.mxu0 0.0
    %829 = vmatprep.subr.mxu0 0.0
    %830 = vmatpush1.msra.mxu0 0.0
    %831 = vmatprep.subr.mxu0 0.0
    %832 = vmatpush1.msra.mxu0 0.0
    %833 = vmatprep.mubr.f32.mxu0 0.0
    %834 = vmatmul.mubr.f32.gmra.mrb[0].mxu0 %v767
    %v835 = vpop.f32.mrb[0].mxu0
    %v836 = vadd.f32 %v764, %v835
    %v837 = vpop.f32.mrb[0].mxu0
    %838 = vdwg.mxu0
    %839 = vmax.xlane.f32.xlu0 %v836
    %v840 = vpop.xlane.xlu0 %839
    %v841 = vsub.f32 %v836, %v840
    %v842 = vmul.f32 %v841, 1.442695
    %v843 = vpow.pop %v842
    %844 = vadd.xlane.f32.xlu0 %v843
    %v845 = vpop.xlane.xlu0 %844
    %v846 = vrcp.pop %v845
    %v847 = vmul.f32 %v843, %v846
    %848 = vst [vmem:[#allocation2] sm:$0xff] %v847
    // Predicated region
    $region22: #{tpu_custom_call.1} parent=1 // pred_check
      _
    $region23: #{tpu_custom_call.1} parent=1 // pred_check_branch
      %850 = sbr.rel (0) target = $region25
    $region24: #{tpu_custom_call.1} parent=1 // pred_region
      %s852 = ssub.s32 128, 128
      %853 = vsyncadd [#allocation3], %s852
      %s855 = sshll.u32 [#allocation2], 4
      %s856 = int_to_ptr.vmem [resolvable:$true] %s855
      %858 = dma.vmem_to_hbm [thread:$0]  %s856, 128, %s5, [#allocation3]
    $region25: #{tpu_custom_call.1} parent=1 // pred_fallthru
      _
    // Predicated region
    $region26: #{tpu_custom_call.1} parent=1 // pred_check
      _
    $region27: #{tpu_custom_call.1} parent=1 // pred_check_branch
      %860 = sbr.rel (0) target = $region29
    $region28: #{tpu_custom_call.1} parent=1 // pred_region
      %861 = dma.done [#allocation3], 128
    $region29: #{tpu_custom_call.1} parent=1 // pred_fallthru
      _
    %862 = vsyncpa [#allocation3], 1

</llo_original>
